<compile_context>
chip_gen: v6e
topology: v6e:2x2x1
jax: 0.10.0
libtpu: 0.0.40
codegen_flags: <defaults>
</compile_context>

<pallas_src>
import jax
import jax.numpy as jnp
from jax.experimental import pallas as pl
from jax.experimental.pallas import tpu as pltpu


def _diabetes_kernel(w1_ref, b1_ref, w2_ref, b2_ref, x_ref, o_ref):
    """x_ref: (tbr, 128) f32 -- 16 samples x 8 features per row; o_ref: (tbr, 16) f32.

    w1_ref: (128, 64) = kron(I16, W1^T), w2_ref: (64, 16) = kron(I16, W2^T),
    b1_ref: (1, 64), b2_ref: (1, 16).  Both contractions run on the MXU; the two
    sigmoids each touch one full tensor, so the kernel stays HBM-bound.
    """
    x = x_ref[...]                                                     # lane-dense load
    h = jnp.dot(x, w1_ref[...], preferred_element_type=jnp.float32)   # MXU: (tbr, 64)
    h = jax.nn.sigmoid(h + b1_ref[...])                                # one sigmoid per layer
    y = jnp.dot(h, w2_ref[...], preferred_element_type=jnp.float32)   # MXU: (tbr, 16)
    o_ref[...] = jax.nn.sigmoid(y + b2_ref[...]).astype(o_ref.dtype)


def _round_up(n, m):
    return (n + m - 1) // m * m


def diabetes_forward(x, w1, b1, w2, b2, *, block_b=131072):
    """Forward pass of DiabetesModel.

    x:  (B, 8) float32                         (same input layout as the PyTorch module)
    w1: (4, 8), b1: (4,)                       (PyTorch nn.Linear layout: weight[out, in])
    w2: (1, 4), b2: (1,)
    returns: (B, 1) float32
    """
    B = x.shape[0]
    x = x.astype(jnp.float32)

    # Pack 16 samples per 128-lane row: (B, 8) -> (B/16, 128) is a free row-major reshape.
    # Pad (one copy) only when B is not already a multiple of 128 samples (8 packed rows).
    Bp = _round_up(B, 128)
    if Bp != B:
        x = jnp.pad(x, ((0, Bp - B), (0, 0)))
    Brows = Bp // 16
    xr = x.reshape(Brows, 128)

    # Block-diagonal "kronified" weights: each layer becomes one lane-dense MXU matmul on the
    # packed layout (the structural zeros are free; the kernel is memory-bound).
    eye16 = jnp.eye(16, dtype=jnp.float32)
    w1k = jnp.kron(eye16, w1.T.astype(jnp.float32))          # (128, 64)
    w2k = jnp.kron(eye16, w2.T.astype(jnp.float32))          # (64, 16)
    b1k = jnp.tile(b1.astype(jnp.float32), 16)[None, :]      # (1, 64)
    b2k = jnp.tile(b2.astype(jnp.float32), 16)[None, :]      # (1, 16)

    # Batch tiling: multi-MiB tiles (amortize the ~0.35us/step pipeline overhead), balanced so
    # padding waste is < 1 tile; split into >=4 steps when the batch is big enough so v7x's
    # two TensorCores both get work on the "parallel" axis.
    rows_target = max(8, block_b // 16)                       # default 8192 rows = 131072 samples
    n_tiles = max(1, -(-Brows // rows_target))
    if Brows // 4 >= 2048:                                    # only split if each piece >= ~1 MiB
        n_tiles = max(n_tiles, 4)
    tbr = min(_round_up(-(-Brows // n_tiles), 8), Brows)
    grid = (-(-Brows // tbr),)                                # partial last block is fine: no
                                                              # cross-batch reduction in-kernel

    tile_in_bytes = tbr * 128 * 4
    vmem_limit = int(min(max(4 * tile_in_bytes + (16 << 20), 32 << 20), 48 << 20))

    resident = lambda shape: pl.BlockSpec(shape, lambda i: (0, 0))    # stays in VMEM across steps
    out = pl.pallas_call(
        _diabetes_kernel,
        out_shape=jax.ShapeDtypeStruct((Brows, 16), jnp.float32),
        grid=grid,
        in_specs=[resident((128, 64)), resident((1, 64)),
                  resident((64, 16)), resident((1, 16)),
                  pl.BlockSpec((tbr, 128), lambda i: (i, 0))],        # lane-dense input tiles
        out_specs=pl.BlockSpec((tbr, 16), lambda i: (i, 0)),
        compiler_params=pltpu.CompilerParams(
            dimension_semantics=("parallel",),                        # batch tiles independent
            vmem_limit_bytes=vmem_limit,                              # v7x-safe (<64 MiB), raised vs v5e's 16 MiB default
        ),
    )(w1k, b1k, w2k, b2k, xr)

    # Free row-major reshape back to PyTorch's (B, 1); padded samples sliced off.
    return out.reshape(-1, 1)[:B]


def init_params(key):
    # Deterministic init mimicking PyTorch Linear's U(-1/sqrt(fan_in), 1/sqrt(fan_in)),
    # stored in PyTorch layout: weight[out, in], bias[out].
    k1, k2, k3, k4 = jax.random.split(key, 4)
    bound1 = 1.0 / jnp.sqrt(8.0)
    bound2 = 1.0 / jnp.sqrt(4.0)
    w1 = jax.random.uniform(k1, (4, 8), jnp.float32, -bound1, bound1)
    b1 = jax.random.uniform(k2, (4,), jnp.float32, -bound1, bound1)
    w2 = jax.random.uniform(k3, (1, 4), jnp.float32, -bound2, bound2)
    b2 = jax.random.uniform(k4, (1,), jnp.float32, -bound2, bound2)
    return w1, b1, w2, b2


if __name__ == "__main__":
    key = jax.random.PRNGKey(0)
    kx, kp = jax.random.split(key)
    batch = 16
    x = jax.random.normal(kx, (batch, 8), dtype=jnp.float32)
    w1, b1, w2, b2 = init_params(kp)

    fwd = jax.jit(diabetes_forward, static_argnames=("block_b",))
    out = jax.block_until_ready(fwd(x, w1, b1, w2, b2))

    # Pure-JAX reference of the PyTorch forward semantics.
    ref = jax.nn.sigmoid(jax.nn.sigmoid(x @ w1.T + b1) @ w2.T + b2)
    assert out.shape == (batch, 1)
    assert jnp.allclose(out, ref, atol=1e-5), "mismatch vs reference"

    print("KERNEL_OK")
</pallas_src>

<mosaic_0001>
module attributes {stable_mosaic.version = 11 : i64} {
  func.func @_diabetes_kernel(%arg0: i32, %arg1: memref<128x64xf32, #tpu.memory_space<vmem>>, %arg2: memref<1x64xf32, #tpu.memory_space<vmem>>, %arg3: memref<64x16xf32, #tpu.memory_space<vmem>>, %arg4: memref<1x16xf32, #tpu.memory_space<vmem>>, %arg5: memref<8x128xf32, #tpu.memory_space<vmem>>, %arg6: memref<8x16xf32, #tpu.memory_space<vmem>>) attributes {dimension_semantics = [#tpu.dimension_semantics<parallel>], iteration_bounds = array<i64: 1>, scalar_prefetch = 0 : i64, scratch_operands = 0 : i64, tpu.core_type = #tpu.core_type<tc>, window_params = [{pipeline_mode = #tpu.pipeline_mode<synchronous>, transform_indices = @transform_0, window_bounds = array<i64: 128, 64>}, {pipeline_mode = #tpu.pipeline_mode<synchronous>, transform_indices = @transform_1, window_bounds = array<i64: 1, 64>}, {pipeline_mode = #tpu.pipeline_mode<synchronous>, transform_indices = @transform_2, window_bounds = array<i64: 64, 16>}, {pipeline_mode = #tpu.pipeline_mode<synchronous>, transform_indices = @transform_3, window_bounds = array<i64: 1, 16>}, {transform_indices = @transform_4, window_bounds = array<i64: 8, 128>}, {transform_indices = @transform_5, window_bounds = array<i64: 8, 16>}]} {
    %c0 = arith.constant 0 : index
    %c0_0 = arith.constant 0 : index
    %0 = vector.load %arg5[%c0, %c0_0] : memref<8x128xf32, #tpu.memory_space<vmem>>, vector<8x128xf32>
    %c0_1 = arith.constant 0 : index
    %c0_2 = arith.constant 0 : index
    %1 = vector.load %arg1[%c0_1, %c0_2] : memref<128x64xf32, #tpu.memory_space<vmem>>, vector<128x64xf32>
    %cst = arith.constant dense<0.000000e+00> : vector<8x64xf32>
    %2 = tpu.matmul %0, %1, %cst {dimension_numbers = #tpu.dot_dimension_numbers<[1], [0], [0], [1], [0, 0, 1, 1], [], []>} : vector<8x128xf32>, vector<128x64xf32>, vector<8x64xf32> -> vector<8x64xf32>
    %c0_3 = arith.constant 0 : index
    %c0_4 = arith.constant 0 : index
    %3 = vector.load %arg2[%c0_3, %c0_4] : memref<1x64xf32, #tpu.memory_space<vmem>>, vector<1x64xf32>
    %4 = vector.broadcast %3 : vector<1x64xf32> to vector<8x64xf32>
    %5 = arith.addf %2, %4 : vector<8x64xf32>
    %6 = arith.negf %5 : vector<8x64xf32>
    %7 = math.exp %6 : vector<8x64xf32>
    %cst_5 = arith.constant 1.000000e+00 : f32
    %8 = vector.broadcast %cst_5 : f32 to vector<8x64xf32>
    %9 = arith.addf %8, %7 : vector<8x64xf32>
    %10 = arith.divf %8, %9 : vector<8x64xf32>
    %c0_6 = arith.constant 0 : index
    %c0_7 = arith.constant 0 : index
    %11 = vector.load %arg3[%c0_6, %c0_7] : memref<64x16xf32, #tpu.memory_space<vmem>>, vector<64x16xf32>
    %cst_8 = arith.constant dense<0.000000e+00> : vector<8x16xf32>
    %12 = tpu.matmul %10, %11, %cst_8 {dimension_numbers = #tpu.dot_dimension_numbers<[1], [0], [0], [1], [0, 0, 1, 1], [], []>} : vector<8x64xf32>, vector<64x16xf32>, vector<8x16xf32> -> vector<8x16xf32>
    %c0_9 = arith.constant 0 : index
    %c0_10 = arith.constant 0 : index
    %13 = vector.load %arg4[%c0_9, %c0_10] : memref<1x16xf32, #tpu.memory_space<vmem>>, vector<1x16xf32>
    %14 = vector.broadcast %13 : vector<1x16xf32> to vector<8x16xf32>
    %15 = arith.addf %12, %14 : vector<8x16xf32>
    %16 = arith.negf %15 : vector<8x16xf32>
    %17 = math.exp %16 : vector<8x16xf32>
    %cst_11 = arith.constant 1.000000e+00 : f32
    %18 = vector.broadcast %cst_11 : f32 to vector<8x16xf32>
    %19 = arith.addf %18, %17 : vector<8x16xf32>
    %20 = arith.divf %18, %19 : vector<8x16xf32>
    %c0_12 = arith.constant 0 : index
    %c0_13 = arith.constant 0 : index
    %21 = vector.load %arg6[%c0_12, %c0_13] : memref<8x16xf32, #tpu.memory_space<vmem>>, vector<8x16xf32>
    tpu.vector_store %arg6[%c0_12, %c0_13], %20 {strides = array<i32>} : memref<8x16xf32, #tpu.memory_space<vmem>>, vector<8x16xf32>,
    return
  }
  func.func @transform_0(%arg0: i32) -> (i32, i32) {
    %c0_i32 = arith.constant 0 : i32
    %c0_i32_0 = arith.constant 0 : i32
    %c0_i32_1 = arith.constant 0 : i32
    return %c0_i32, %c0_i32_0 : i32, i32
  }
  func.func @transform_1(%arg0: i32) -> (i32, i32) {
    %c0_i32 = arith.constant 0 : i32
    %c0_i32_0 = arith.constant 0 : i32
    %c0_i32_1 = arith.constant 0 : i32
    return %c0_i32, %c0_i32_0 : i32, i32
  }
  func.func @transform_2(%arg0: i32) -> (i32, i32) {
    %c0_i32 = arith.constant 0 : i32
    %c0_i32_0 = arith.constant 0 : i32
    %c0_i32_1 = arith.constant 0 : i32
    return %c0_i32, %c0_i32_0 : i32, i32
  }
  func.func @transform_3(%arg0: i32) -> (i32, i32) {
    %c0_i32 = arith.constant 0 : i32
    %c0_i32_0 = arith.constant 0 : i32
    %c0_i32_1 = arith.constant 0 : i32
    return %c0_i32, %c0_i32_0 : i32, i32
  }
  func.func @transform_4(%arg0: i32) -> (i32, i32) {
    %c0_i32 = arith.constant 0 : i32
    %c0_i32_0 = arith.constant 0 : i32
    return %arg0, %c0_i32 : i32, i32
  }
  func.func @transform_5(%arg0: i32) -> (i32, i32) {
    %c0_i32 = arith.constant 0 : i32
    %c0_i32_0 = arith.constant 0 : i32
    return %arg0, %c0_i32 : i32, i32
  }
}

</mosaic_0001>

<llo_original>
// kernel: tile.14
$region0: #{tile.14}
  %s0 = inlined_call_operand.vmem [shape: f32[16,4], index: 0, kind: input, shape index: {}]
  %s1 = inlined_call_operand.vmem [shape: f32[1,64], index: 1, kind: output, shape index: {}]
  $region1: #{tile.14} parent=0
    #allocation0 [shape = 'u8[4096]{0}', space=vmem, size = 0x1000, scoped, tag = 'scoped mem for output reshape']
    %v2 = vld [vmem:[%s0] sm:$0x1]
    %vm3 = vcmask 31744
    %4 = vst.msk [vmem:[#allocation0] sm:$0x1] %vm3, %v2
    %s5 = scalar_lea.vmem %s0, 15
    %v6 = vld [vmem:[%s5] sm:$0x1]
    %7 = vrot.lane.b32.xlu0 %v6, 60
    %v8 = vpop.permute.xlu0 %7
    %vm9 = vcmask 523744
    %10 = vst.msk [vmem:[#allocation0] sm:$0x1] %vm9, %v8
    %s11 = scalar_lea.vmem %s0, 14
    %v12 = vld [vmem:[%s11] sm:$0x1]
    %13 = vrot.lane.b32.xlu0 %v12, 56
    %v14 = vpop.permute.xlu0 %13
    %vm15 = vcmask 490944
    %16 = vst.msk [vmem:[#allocation0] sm:$0x1] %vm15, %v14
    %s17 = scalar_lea.vmem %s0, 13
    %v18 = vld [vmem:[%s17] sm:$0x1]
    %19 = vrot.lane.b32.xlu0 %v18, 52
    %v20 = vpop.permute.xlu0 %19
    %vm21 = vcmask 458144
    %22 = vst.msk [vmem:[#allocation0] sm:$0x1] %vm21, %v20
    %s23 = scalar_lea.vmem %s0, 12
    %v24 = vld [vmem:[%s23] sm:$0x1]
    %25 = vrot.lane.b32.xlu0 %v24, 48
    %v26 = vpop.permute.xlu0 %25
    %vm27 = vcmask 425344
    %28 = vst.msk [vmem:[#allocation0] sm:$0x1] %vm27, %v26
    %s29 = scalar_lea.vmem %s0, 11
    %v30 = vld [vmem:[%s29] sm:$0x1]
    %31 = vrot.lane.b32.xlu0 %v30, 44
    %v32 = vpop.permute.xlu0 %31
    %vm33 = vcmask 392544
    %34 = vst.msk [vmem:[#allocation0] sm:$0x1] %vm33, %v32
    %s35 = scalar_lea.vmem %s0, 10
    %v36 = vld [vmem:[%s35] sm:$0x1]
    %37 = vrot.lane.b32.xlu0 %v36, 40
    %v38 = vpop.permute.xlu0 %37
    %vm39 = vcmask 359744
    %40 = vst.msk [vmem:[#allocation0] sm:$0x1] %vm39, %v38
    %s41 = scalar_lea.vmem %s0, 9
    %v42 = vld [vmem:[%s41] sm:$0x1]
    %43 = vrot.lane.b32.xlu0 %v42, 36
    %v44 = vpop.permute.xlu0 %43
    %vm45 = vcmask 326944
    %46 = vst.msk [vmem:[#allocation0] sm:$0x1] %vm45, %v44
    %s47 = scalar_lea.vmem %s0, 8
    %v48 = vld [vmem:[%s47] sm:$0x1]
    %49 = vrot.lane.b32.xlu0 %v48, 32
    %v50 = vpop.permute.xlu0 %49
    %vm51 = vcmask 294144
    %52 = vst.msk [vmem:[#allocation0] sm:$0x1] %vm51, %v50
    %s53 = scalar_lea.vmem %s0, 7
    %v54 = vld [vmem:[%s53] sm:$0x1]
    %55 = vrot.lane.b32.xlu0 %v54, 28
    %v56 = vpop.permute.xlu0 %55
    %vm57 = vcmask 261344
    %58 = vst.msk [vmem:[#allocation0] sm:$0x1] %vm57, %v56
    %s59 = scalar_lea.vmem %s0, 6
    %v60 = vld [vmem:[%s59] sm:$0x1]
    %61 = vrot.lane.b32.xlu0 %v60, 24
    %v62 = vpop.permute.xlu0 %61
    %vm63 = vcmask 228544
    %64 = vst.msk [vmem:[#allocation0] sm:$0x1] %vm63, %v62
    %s65 = scalar_lea.vmem %s0, 5
    %v66 = vld [vmem:[%s65] sm:$0x1]
    %67 = vrot.lane.b32.xlu0 %v66, 20
    %v68 = vpop.permute.xlu0 %67
    %vm69 = vcmask 195744
    %70 = vst.msk [vmem:[#allocation0] sm:$0x1] %vm69, %v68
    %s71 = scalar_lea.vmem %s0, 4
    %v72 = vld [vmem:[%s71] sm:$0x1]
    %73 = vrot.lane.b32.xlu0 %v72, 16
    %v74 = vpop.permute.xlu0 %73
    %vm75 = vcmask 162944
    %76 = vst.msk [vmem:[#allocation0] sm:$0x1] %vm75, %v74
    %s77 = scalar_lea.vmem %s0, 3
    %v78 = vld [vmem:[%s77] sm:$0x1]
    %79 = vrot.lane.b32.xlu0 %v78, 12
    %v80 = vpop.permute.xlu0 %79
    %vm81 = vcmask 130144
    %82 = vst.msk [vmem:[#allocation0] sm:$0x1] %vm81, %v80
    %s83 = scalar_lea.vmem %s0, 2
    %v84 = vld [vmem:[%s83] sm:$0x1]
    %85 = vrot.lane.b32.xlu0 %v84, 8
    %v86 = vpop.permute.xlu0 %85
    %vm87 = vcmask 97344
    %88 = vst.msk [vmem:[#allocation0] sm:$0x1] %vm87, %v86
    %s89 = scalar_lea.vmem %s0, 1
    %v90 = vld [vmem:[%s89] sm:$0x1]
    %91 = vrot.lane.b32.xlu0 %v90, 4
    %v92 = vpop.permute.xlu0 %91
    %vm93 = vcmask 64544
    %94 = vst.msk [vmem:[#allocation0] sm:$0x1] %vm93, %v92
    %s96 = sshll.u32 1, 1
    %s97 = ssub.s32 %s96, 1
    %v99 = vld [vmem:[#allocation0] sm:%s97]
    %s100 = sshll.u32 1, 1
    %s101 = ssub.s32 %s100, 1
    %102 = vst [vmem:[%s1] sm:%s101] %v99

// kernel: diabetes_forward.1
$region0: #{diabetes_forward.1}
  #allocation0 [shape = 'u32[]', space=smem, size = 0x4, offset = 0x4, fixed_abs, tag = 'smem constant byte address 0x4 - core index']
  #allocation1 [shape = 'u32[144,128]{1,0:T(1,128)}', space=vmem, size = 0x12000, scoped, tag = 'internal scratch']
  %s0 = inlined_call_operand.vmem [shape: f32[128,64], index: 0, kind: input, shape index: {}]
  %s1 = inlined_call_operand.vmem [shape: f32[1,64], index: 1, kind: input, shape index: {}]
  %s2 = inlined_call_operand.vmem [shape: f32[64,16], index: 2, kind: input, shape index: {}]
  %s3 = inlined_call_operand.vmem [shape: f32[1,16], index: 3, kind: input, shape index: {}]
  %s4 = inlined_call_operand.vmem [shape: f32[8,128], index: 4, kind: input, shape index: {}]
  %s5 = inlined_call_operand.vmem [shape: f32[8,16], index: 5, kind: output, shape index: {}]
  %s6 = sld [smem:[#allocation0]]
  $region30: #{diabetes_forward.1} parent=0
    _
  %s8 = ssub.s32 1, %s6
  %s9 = scalar_select 0, %s8, %s6
  // Predicated region
  $region2: #{diabetes_forward.1} parent=0 // pred_check
    _
  $region3: #{diabetes_forward.1} parent=0 // pred_check_branch
    %11 = sbr.rel (0) target = $region5
  $region4: #{diabetes_forward.1} parent=0 // pred_region
    _
  $region5: #{diabetes_forward.1} parent=0 // pred_fallthru
    _
  // Predicated region
  $region6: #{diabetes_forward.1} parent=0 // pred_check
    _
  $region7: #{diabetes_forward.1} parent=0 // pred_check_branch
    %13 = sbr.rel (0) target = $region9
  $region8: #{diabetes_forward.1} parent=0 // pred_region
    _
  $region9: #{diabetes_forward.1} parent=0 // pred_fallthru
    _
  // Predicated region
  $region10: #{diabetes_forward.1} parent=0 // pred_check
    _
  $region11: #{diabetes_forward.1} parent=0 // pred_check_branch
    %15 = sbr.rel (0) target = $region13
  $region12: #{diabetes_forward.1} parent=0 // pred_region
    _
  $region13: #{diabetes_forward.1} parent=0 // pred_fallthru
    _
  // Predicated region
  $region14: #{diabetes_forward.1} parent=0 // pred_check
    _
  $region15: #{diabetes_forward.1} parent=0 // pred_check_branch
    %17 = sbr.rel (0) target = $region17
  $region16: #{diabetes_forward.1} parent=0 // pred_region
    _
  $region17: #{diabetes_forward.1} parent=0 // pred_fallthru
    _
  // Predicated region
  $region18: #{diabetes_forward.1} parent=0 // pred_check
    _
  $region19: #{diabetes_forward.1} parent=0 // pred_check_branch
    %19 = sbr.rel (0) target = $region21
  $region20: #{diabetes_forward.1} parent=0 // pred_region
    _
  $region21: #{diabetes_forward.1} parent=0 // pred_fallthru
    _
  %v20 = vld [vmem:[%s4] sm:$0xff]
  %v21 = vld [vmem:[%s0] sm:$0xff]
  %v22 = vld [vmem:[%s0 + $0x8] sm:$0xff]
  %v23 = vld [vmem:[%s0 + $0x10] sm:$0xff]
  %v24 = vld [vmem:[%s0 + $0x18] sm:$0xff]
  %v25 = vld [vmem:[%s0 + $0x20] sm:$0xff]
  %v26 = vld [vmem:[%s0 + $0x28] sm:$0xff]
  %v27 = vld [vmem:[%s0 + $0x30] sm:$0xff]
  %v28 = vld [vmem:[%s0 + $0x38] sm:$0xff]
  %v29 = vld [vmem:[%s0 + $0x40] sm:$0xff]
  %v30 = vld [vmem:[%s0 + $0x48] sm:$0xff]
  %v31 = vld [vmem:[%s0 + $0x50] sm:$0xff]
  %v32 = vld [vmem:[%s0 + $0x58] sm:$0xff]
  %v33 = vld [vmem:[%s0 + $0x60] sm:$0xff]
  %v34 = vld [vmem:[%s0 + $0x68] sm:$0xff]
  %v35 = vld [vmem:[%s0 + $0x70] sm:$0xff]
  %v36 = vld [vmem:[%s0 + $0x78] sm:$0xff]
  %v37 = vld [vmem:[%s1] sm:$0x1]
  %v39 = vlaneseq
  %v40 = vshrl.u32 %v39, 7
  %v41 = vsub.s32 0, %v40
  %v42 = vrot.slane %v37, %v41
  %44 = vmatprep.subr.mxu0 0.0
  %45 = vmatpush1.msra.mxu0 %v36
  %46 = vmatprep.subr.mxu0 0.0
  %47 = vmatpush1.msra.mxu0 %v35
  %48 = vmatprep.subr.mxu0 0.0
  %49 = vmatpush1.msra.mxu0 %v34
  %50 = vmatprep.subr.mxu0 0.0
  %51 = vmatpush1.msra.mxu0 %v33
  %52 = vmatprep.subr.mxu0 0.0
  %53 = vmatpush1.msra.mxu0 %v32
  %54 = vmatprep.subr.mxu0 0.0
  %55 = vmatpush1.msra.mxu0 %v31
  %56 = vmatprep.subr.mxu0 0.0
  %57 = vmatpush1.msra.mxu0 %v30
  %58 = vmatprep.subr.mxu0 0.0
  %59 = vmatpush1.msra.mxu0 %v29
  %60 = vmatprep.subr.mxu0 0.0
  %61 = vmatpush1.msra.mxu0 %v28
  %62 = vmatprep.subr.mxu0 0.0
  %63 = vmatpush1.msra.mxu0 %v27
  %64 = vmatprep.subr.mxu0 0.0
  %65 = vmatpush1.msra.mxu0 %v26
  %66 = vmatprep.subr.mxu0 0.0
  %67 = vmatpush1.msra.mxu0 %v25
  %68 = vmatprep.subr.mxu0 0.0
  %69 = vmatpush1.msra.mxu0 %v24
  %70 = vmatprep.subr.mxu0 0.0
  %71 = vmatpush1.msra.mxu0 %v23
  %72 = vmatprep.subr.mxu0 0.0
  %73 = vmatpush1.msra.mxu0 %v22
  %74 = vmatprep.subr.mxu0 0.0
  %75 = vmatpush1.msra.mxu0 %v21
  %76 = vmatprep.subr.mxu0 0.0
  %77 = vmatpush2.msra.mxu0 0.0
  %78 = vmatprep.subr.mxu0 0.0
  %79 = vmatpush2.msra.mxu0 0.0
  %80 = vmatprep.subr.mxu0 0.0
  %81 = vmatpush2.msra.mxu0 0.0
  %82 = vmatprep.subr.mxu0 0.0
  %83 = vmatpush2.msra.mxu0 0.0
  %84 = vmatprep.subr.mxu0 0.0
  %85 = vmatpush2.msra.mxu0 0.0
  %86 = vmatprep.subr.mxu0 0.0
  %87 = vmatpush2.msra.mxu0 0.0
  %88 = vmatprep.subr.mxu0 0.0
  %89 = vmatpush2.msra.mxu0 0.0
  %90 = vmatprep.subr.mxu0 0.0
  %91 = vmatpush2.msra.mxu0 0.0
  %92 = vmatprep.subr.mxu0 0.0
  %93 = vmatpush2.msra.mxu0 0.0
  %94 = vmatprep.subr.mxu0 0.0
  %95 = vmatpush2.msra.mxu0 0.0
  %96 = vmatprep.subr.mxu0 0.0
  %97 = vmatpush2.msra.mxu0 0.0
  %98 = vmatprep.subr.mxu0 0.0
  %99 = vmatpush2.msra.mxu0 0.0
  %100 = vmatprep.subr.mxu0 0.0
  %101 = vmatpush2.msra.mxu0 0.0
  %102 = vmatprep.subr.mxu0 0.0
  %103 = vmatpush2.msra.mxu0 0.0
  %104 = vmatprep.subr.mxu0 0.0
  %105 = vmatpush2.msra.mxu0 0.0
  %106 = vmatprep.subr.mxu0 0.0
  %107 = vmatpush2.msra.mxu0 0.0
  %108 = vmatprep.mubr.f32.mxu0 0.0
  %109 = vmatmul.mubr.f32.gmra.mxu0 %v20
  %v110 = vpop.f32.mrf.mxu0
  %v111 = vadd.f32 %v42, %v110
  %v112 = vpop.f32.mrf.mxu0
  %113 = vdwg.mxu0
  %v114 = vxor.u32 %v111, 2147483648
  %v115 = vmul.f32 %v114, 1.442695
  %v116 = vpow.pop %v115
  %v117 = vadd.f32 %v116, 1.0
  %v118 = vrcp.pop %v117
  %v119 = vmul.f32 1.0, %v118
  %v120 = vld [vmem:[%s2] sm:$0xff]
  %v121 = vld [vmem:[%s2 + $0x8] sm:$0xff]
  %v122 = vld [vmem:[%s2 + $0x10] sm:$0xff]
  %v123 = vld [vmem:[%s2 + $0x18] sm:$0xff]
  %v124 = vld [vmem:[%s2 + $0x20] sm:$0xff]
  %v125 = vld [vmem:[%s2 + $0x28] sm:$0xff]
  %v126 = vld [vmem:[%s2 + $0x30] sm:$0xff]
  %v127 = vld [vmem:[%s2 + $0x38] sm:$0xff]
  %v128 = vld [vmem:[%s3] sm:$0x1]
  %v130 = vlaneseq
  %v131 = vshrl.u32 %v130, 7
  %v132 = vsub.s32 0, %v131
  %v133 = vrot.slane %v128, %v132
  %vm135 = vcmask 523264
  %v137 = vsel %vm135, %v119, 0
  %139 = vmatprep.subr.mxu0 0.0
  %140 = vmatpush1.msra.mxu0 0.0
  %141 = vmatprep.subr.mxu0 0.0
  %142 = vmatpush1.msra.mxu0 0.0
  %143 = vmatprep.subr.mxu0 0.0
  %144 = vmatpush1.msra.mxu0 0.0
  %145 = vmatprep.subr.mxu0 0.0
  %146 = vmatpush1.msra.mxu0 0.0
  %147 = vmatprep.subr.mxu0 0.0
  %148 = vmatpush1.msra.mxu0 0.0
  %149 = vmatprep.subr.mxu0 0.0
  %150 = vmatpush1.msra.mxu0 0.0
  %151 = vmatprep.subr.mxu0 0.0
  %152 = vmatpush1.msra.mxu0 0.0
  %153 = vmatprep.subr.mxu0 0.0
  %154 = vmatpush1.msra.mxu0 0.0
  %155 = vmatprep.subr.mxu0 0.0
  %156 = vmatpush1.msra.mxu0 %v127
  %157 = vmatprep.subr.mxu0 0.0
  %158 = vmatpush1.msra.mxu0 %v126
  %159 = vmatprep.subr.mxu0 0.0
  %160 = vmatpush1.msra.mxu0 %v125
  %161 = vmatprep.subr.mxu0 0.0
  %162 = vmatpush1.msra.mxu0 %v124
  %163 = vmatprep.subr.mxu0 0.0
  %164 = vmatpush1.msra.mxu0 %v123
  %165 = vmatprep.subr.mxu0 0.0
  %166 = vmatpush1.msra.mxu0 %v122
  %167 = vmatprep.subr.mxu0 0.0
  %168 = vmatpush1.msra.mxu0 %v121
  %169 = vmatprep.subr.mxu0 0.0
  %170 = vmatpush1.msra.mxu0 %v120
  %171 = vmatprep.subr.mxu0 0.0
  %172 = vmatpush2.msra.mxu0 0.0
  %173 = vmatprep.subr.mxu0 0.0
  %174 = vmatpush2.msra.mxu0 0.0
  %175 = vmatprep.subr.mxu0 0.0
  %176 = vmatpush2.msra.mxu0 0.0
  %177 = vmatprep.subr.mxu0 0.0
  %178 = vmatpush2.msra.mxu0 0.0
  %179 = vmatprep.subr.mxu0 0.0
  %180 = vmatpush2.msra.mxu0 0.0
  %181 = vmatprep.subr.mxu0 0.0
  %182 = vmatpush2.msra.mxu0 0.0
  %183 = vmatprep.subr.mxu0 0.0
  %184 = vmatpush2.msra.mxu0 0.0
  %185 = vmatprep.subr.mxu0 0.0
  %186 = vmatpush2.msra.mxu0 0.0
  %187 = vmatprep.subr.mxu0 0.0
  %188 = vmatpush2.msra.mxu0 0.0
  %189 = vmatprep.subr.mxu0 0.0
  %190 = vmatpush2.msra.mxu0 0.0
  %191 = vmatprep.subr.mxu0 0.0
  %192 = vmatpush2.msra.mxu0 0.0
  %193 = vmatprep.subr.mxu0 0.0
  %194 = vmatpush2.msra.mxu0 0.0
  %195 = vmatprep.subr.mxu0 0.0
  %196 = vmatpush2.msra.mxu0 0.0
  %197 = vmatprep.subr.mxu0 0.0
  %198 = vmatpush2.msra.mxu0 0.0
  %199 = vmatprep.subr.mxu0 0.0
  %200 = vmatpush2.msra.mxu0 0.0
  %201 = vmatprep.subr.mxu0 0.0
  %202 = vmatpush2.msra.mxu0 0.0
  %203 = vmatprep.mubr.f32.mxu0 0.0
  %204 = vmatmul.mubr.f32.gmra.mxu0 %v137
  %v205 = vpop.f32.mrf.mxu0
  %v206 = vadd.f32 %v133, %v205
  %v207 = vpop.f32.mrf.mxu0
  %208 = vdwg.mxu0
  %v209 = vxor.u32 %v206, 2147483648
  %v210 = vmul.f32 %v209, 1.442695
  %v211 = vpow.pop %v210
  %v212 = vadd.f32 %v211, 1.0
  %v213 = vrcp.pop %v212
  %v214 = vmul.f32 1.0, %v213
  %vm215 = vcmask 130048
  %216 = vst.msk [vmem:[%s5] sm:$0xff] %vm215, %v214
  // Predicated region
  $region22: #{diabetes_forward.1} parent=0 // pred_check
    _
  $region23: #{diabetes_forward.1} parent=0 // pred_check_branch
    %218 = sbr.rel (0) target = $region25
  $region24: #{diabetes_forward.1} parent=0 // pred_region
    _
  $region25: #{diabetes_forward.1} parent=0 // pred_fallthru
    _
  // Predicated region
  $region26: #{diabetes_forward.1} parent=0 // pred_check
    _
  $region27: #{diabetes_forward.1} parent=0 // pred_check_branch
    %220 = sbr.rel (0) target = $region29
  $region28: #{diabetes_forward.1} parent=0 // pred_region
    _
  $region29: #{diabetes_forward.1} parent=0 // pred_fallthru
    _

</llo_original>
